<compile_context>
chip_gen: v7x
topology: tpu7x:2x2x1
jax: 0.10.0
libtpu: 0.0.40
codegen_flags: <defaults>
</compile_context>

<pallas_src>
import math

import jax
import jax.numpy as jnp
import numpy as np
from jax.experimental import pallas as pl
from jax.experimental.pallas import tpu as pltpu


# ----------------------------------------------------------------------------
# Kernel: lane-dense broadcast add with fused dtype cast.
# ----------------------------------------------------------------------------
def _add_pe_kernel(x_ref, pe_ref, o_ref):
    # x_ref: (row_tile, lane_tile) in native input dtype
    # pe_ref: (1, lane_tile), broadcast over sublanes
    x = x_ref[...].astype(jnp.float32)
    pe = pe_ref[...].astype(jnp.float32)
    o_ref[...] = (x + pe).astype(o_ref.dtype)


# ----------------------------------------------------------------------------
# Tiling helpers
# ----------------------------------------------------------------------------
def _vmem_capacity_bytes():
    try:
        return int(pltpu.get_tpu_info().vmem_capacity_bytes)
    except Exception:
        return 64 << 20  # conservative: v7x per-TC physical VMEM


def _cdiv(a, b):
    return (a + b - 1) // b


def _choose_tiles(n_rows, lane_len, in_itemsize, out_itemsize):
    """Pick (row_tile, lane_tile, vmem_limit_bytes).

    Double-buffered working set ~= 2*(x block) + 2*(out block) + small pe;
    keep it well under per-generation VMEM while using big blocks to amortize
    the ~0.35us/step grid overhead.
    """
    cap = _vmem_capacity_bytes()
    work_budget = min(cap // 3, 32 << 20)          # double-buffered working set
    vmem_limit = min(cap // 2, 64 << 20)           # explicit scoped-VMEM limit
    per_elem = 2 * (in_itemsize + out_itemsize)    # 2x in-buf + 2x out-buf
    block_elems = max(8 * 128, work_budget // per_elem)

    # Lane tiling: full S*D extent when it fits with >=8 rows, otherwise a
    # multiple of 128 so stores stay unmasked full-width vst.
    max_lane = max(128, (block_elems // 8) // 128 * 128)
    lane_tile = lane_len if lane_len <= max_lane else max_lane
    lane_grid = _cdiv(lane_len, lane_tile)

    # Row tiling: as many rows as the budget allows, multiple of 8 unless the
    # block covers the full row extent.
    rows_budget = max(8, block_elems // lane_tile)
    row_tile = min(n_rows, rows_budget)
    if row_tile < n_rows:
        row_tile = max(8, (row_tile // 8) * 8)

    # v7x: make sure the parallel grid has >=2 steps so both TCs are fed.
    if row_tile == n_rows and n_rows >= 16 and lane_grid == 1:
        row_tile = max(8, (n_rows // 2) // 8 * 8)

    return row_tile, lane_tile, vmem_limit


# ----------------------------------------------------------------------------
# pallas_call wrapper
# ----------------------------------------------------------------------------
_PALLAS_MIN_OUT_BYTES = 512 * 1024  # below this, plain XLA add wins


def add_positional_encoding(patch_input, position_enc, *, force_pallas=False):
    """hidden = patch_input + position_enc, broadcasting over leading dims."""
    S, D = position_enc.shape
    if patch_input.shape[-2:] != (S, D):
        raise ValueError(
            f"patch_input trailing dims {patch_input.shape[-2:]} must equal "
            f"position_enc shape {(S, D)}")

    out_dtype = jnp.result_type(patch_input.dtype, position_enc.dtype)
    lead_shape = patch_input.shape[:-2]
    n_rows = int(np.prod(lead_shape)) if lead_shape else 1
    L = S * D

    in_item = jnp.dtype(patch_input.dtype).itemsize
    out_item = jnp.dtype(out_dtype).itemsize
    pe_item = jnp.dtype(position_enc.dtype).itemsize
    out_bytes = n_rows * L * out_item

    # Tiny inputs: fixed pallas_call / (8,128)-padding overhead exceeds the add
    # itself; XLA's fused elementwise op is strictly faster.
    if not force_pallas and out_bytes < _PALLAS_MIN_OUT_BYTES:
        return patch_input + position_enc

    # Zero-copy, lane-dense flattening (native dtypes; cast is fused in-kernel).
    x2 = patch_input.reshape(n_rows, L)
    pe2 = position_enc.reshape(1, L)

    row_tile, lane_tile, vmem_limit = _choose_tiles(n_rows, L, in_item, out_item)
    grid = (pl.cdiv(n_rows, row_tile), pl.cdiv(L, lane_tile))

    cost = pl.CostEstimate(
        flops=n_rows * L,
        transcendentals=0,
        bytes_accessed=n_rows * L * (in_item + out_item) + L * pe_item,
    )

    out = pl.pallas_call(
        _add_pe_kernel,
        grid=grid,
        in_specs=[
            pl.BlockSpec((row_tile, lane_tile), lambda i, j: (i, j)),  # patch rows
            pl.BlockSpec((1, lane_tile), lambda i, j: (0, j)),         # pe
        ],
        out_specs=pl.BlockSpec((row_tile, lane_tile), lambda i, j: (i, j)),
        out_shape=jax.ShapeDtypeStruct((n_rows, L), out_dtype),
        compiler_params=pltpu.CompilerParams(
            dimension_semantics=("parallel", "parallel"),
            vmem_limit_bytes=int(vmem_limit)),
        cost_estimate=cost,
    )(x2, pe2)

    return out.reshape(patch_input.shape)


# ----------------------------------------------------------------------------
# Module wrapper (same constructor signature / semantics as the PyTorch class)
# ----------------------------------------------------------------------------
class PatchTSMixerPositionalEncodingPallas:
    def __init__(self, use_positional_encoding, positional_encoding_type,
                 num_patches, d_model, *, key=None):
        if use_positional_encoding:
            self.position_enc = self._init_pe(
                positional_encoding_type, num_patches, d_model, key)
        else:
            self.position_enc = jnp.zeros((num_patches, d_model), jnp.float32)

    @staticmethod
    def _init_pe(positional_encoding_type, num_patches, d_model, key):
        if positional_encoding_type == "random":
            if key is None:
                key = jax.random.PRNGKey(0)
            return jax.random.normal(key, (num_patches, d_model), jnp.float32)
        elif positional_encoding_type == "sincos":
            position = jnp.arange(num_patches, dtype=jnp.float32)[:, None]
            div_term = jnp.exp(
                jnp.arange(0, d_model, 2, dtype=jnp.float32)
                * -(math.log(10000.0) / d_model))
            pe = jnp.zeros((num_patches, d_model), jnp.float32)
            pe = pe.at[:, 0::2].set(jnp.sin(position * div_term))
            # Slice guards odd d_model (upstream torch code assumes even).
            pe = pe.at[:, 1::2].set(jnp.cos(position * div_term)[:, : d_model // 2])
            pe = pe - pe.mean()
            pe = pe / (jnp.std(pe, ddof=1) * 10)   # torch.std is unbiased (ddof=1)
            return pe
        else:
            raise ValueError(
                f"{positional_encoding_type} is not a valid positional encoder. "
                "Available types are 'random' and 'sincos'.")

    def __call__(self, patch_input, *, force_pallas=False):
        return add_positional_encoding(patch_input, self.position_enc,
                                       force_pallas=force_pallas)


# ----------------------------------------------------------------------------
# Main
# ----------------------------------------------------------------------------
if __name__ == "__main__":
    B, C, S, D = 2, 4, 16, 64   # batch, num_channels, num_patches, d_model

    root = jax.random.PRNGKey(0)
    k_x, k_pe, k_big = jax.random.split(root, 3)
    x = jax.random.normal(k_x, (B, C, S, D), jnp.float32)

    # --- sincos positional encoding (forced through the Pallas kernel) ---
    mod_sincos = PatchTSMixerPositionalEncodingPallas(
        use_positional_encoding=True, positional_encoding_type="sincos",
        num_patches=S, d_model=D)
    out_sincos = jax.block_until_ready(mod_sincos(x, force_pallas=True))
    ref_sincos = x + mod_sincos.position_enc[None, None, :, :]
    np.testing.assert_allclose(np.asarray(out_sincos), np.asarray(ref_sincos),
                               rtol=0, atol=0)
    assert out_sincos.shape == (B, C, S, D)

    # --- random positional encoding, bf16 input (fused in-kernel upcast) ---
    mod_rand = PatchTSMixerPositionalEncodingPallas(
        use_positional_encoding=True, positional_encoding_type="random",
        num_patches=S, d_model=D, key=k_pe)
    x_bf16 = x.astype(jnp.bfloat16)
    out_rand = jax.block_until_ready(mod_rand(x_bf16, force_pallas=True))
    assert out_rand.dtype == jnp.float32
    ref_rand = x_bf16.astype(jnp.float32) + mod_rand.position_enc[None, None, :, :]
    np.testing.assert_allclose(np.asarray(out_rand), np.asarray(ref_rand),
                               rtol=0, atol=0)

    # --- larger odd-sized batch*channels: auto Pallas path, ragged row blocks ---
    B2, C2, S2, D2 = 3, 7, 64, 128
    x_big = jax.random.normal(k_big, (B2, C2, S2, D2), jnp.float32)
    mod_big = PatchTSMixerPositionalEncodingPallas(
        use_positional_encoding=True, positional_encoding_type="sincos",
        num_patches=S2, d_model=D2)
    out_big = jax.block_until_ready(mod_big(x_big))
    ref_big = x_big + mod_big.position_enc[None, None, :, :]
    np.testing.assert_allclose(np.asarray(out_big), np.asarray(ref_big),
                               rtol=0, atol=0)

    # --- no positional encoding (zeros parameter); tiny input -> XLA fallback ---
    mod_zero = PatchTSMixerPositionalEncodingPallas(
        use_positional_encoding=False, positional_encoding_type="sincos",
        num_patches=S, d_model=D)
    out_zero = jax.block_until_ready(mod_zero(x))
    np.testing.assert_allclose(np.asarray(out_zero), np.asarray(x),
                               rtol=0, atol=0)

    print("KERNEL_OK")
</pallas_src>

<mosaic_0001>
module attributes {stable_mosaic.version = 11 : i64} {
  func.func @_add_pe_kernel(%arg0: i32, %arg1: i32, %arg2: memref<8x1024xf32, #tpu.memory_space<vmem>>, %arg3: memref<1x1024xf32, #tpu.memory_space<vmem>>, %arg4: memref<8x1024xf32, #tpu.memory_space<vmem>>) attributes {dimension_semantics = [#tpu.dimension_semantics<parallel>, #tpu.dimension_semantics<parallel>], iteration_bounds = array<i64: 1, 1>, scalar_prefetch = 0 : i64, scratch_operands = 0 : i64, tpu.core_type = #tpu.core_type<tc>, window_params = [{transform_indices = @transform_0, window_bounds = array<i64: 8, 1024>}, {transform_indices = @transform_1, window_bounds = array<i64: 1, 1024>}, {transform_indices = @transform_2, window_bounds = array<i64: 8, 1024>}]} {
    %c0 = arith.constant 0 : index
    %c0_0 = arith.constant 0 : index
    %0 = vector.load %arg2[%c0, %c0_0] : memref<8x1024xf32, #tpu.memory_space<vmem>>, vector<8x1024xf32>
    %c0_1 = arith.constant 0 : index
    %c0_2 = arith.constant 0 : index
    %1 = vector.load %arg3[%c0_1, %c0_2] : memref<1x1024xf32, #tpu.memory_space<vmem>>, vector<1x1024xf32>
    %2 = vector.broadcast %1 : vector<1x1024xf32> to vector<8x1024xf32>
    %3 = arith.addf %0, %2 : vector<8x1024xf32>
    %c0_3 = arith.constant 0 : index
    %c0_4 = arith.constant 0 : index
    %4 = vector.load %arg4[%c0_3, %c0_4] : memref<8x1024xf32, #tpu.memory_space<vmem>>, vector<8x1024xf32>
    tpu.vector_store %arg4[%c0_3, %c0_4], %3 {strides = array<i32>} : memref<8x1024xf32, #tpu.memory_space<vmem>>, vector<8x1024xf32>,
    return
  }
  func.func @transform_0(%arg0: i32, %arg1: i32) -> (i32, i32) {
    %c0_i32 = arith.constant 0 : i32
    return %arg0, %arg1 : i32, i32
  }
  func.func @transform_1(%arg0: i32, %arg1: i32) -> (i32, i32) {
    %c0_i32 = arith.constant 0 : i32
    %c0_i32_0 = arith.constant 0 : i32
    return %c0_i32, %arg1 : i32, i32
  }
  func.func @transform_2(%arg0: i32, %arg1: i32) -> (i32, i32) {
    %c0_i32 = arith.constant 0 : i32
    return %arg0, %arg1 : i32, i32
  }
}

</mosaic_0001>

<llo_original>
// kernel: tpu_custom_call.1
$region0: #{tpu_custom_call.1}
  #allocation0 [shape = 'u32[]', space=smem, size = 0x4, offset = 0x4, fixed_abs, tag = 'smem constant byte address 0x4 - core index']
  #allocation1 [shape = 'u32[144,128]{1,0:T(1,128)}', space=vmem, size = 0x12000, scoped, tag = 'internal scratch']
  %s0 = inlined_call_operand.hbm [shape: f32[8,1024], index: 0, kind: input, shape index: {}]
  %s1 = inlined_call_operand.hbm [shape: f32[1,1024], index: 1, kind: input, shape index: {}]
  %s2 = inlined_call_operand.hbm [shape: f32[8,1024], index: 2, kind: output, shape index: {}]
  %s3 = sld [smem:[#allocation0]]
  $region26: #{tpu_custom_call.1} parent=0
    _
  %s5 = ssub.s32 1, %s3
  %s6 = scalar_select 0, %s5, %s3
  $region1: #{tpu_custom_call.1} parent=0
    #allocation2 [shape = 'u8[32768]{0}', space=vmem, size = 0x8000, scoped, tag = 'input window, operand 0, single buffered']
    #allocation3 [shape = 's32[1]{0}', space=sflag, size = 0x4, scoped, tag = 'scoped memory for tpu_custom_call.1']
    #allocation4 [shape = 's32[1]{0}', space=sflag, size = 0x4, scoped, tag = 'scoped memory for tpu_custom_call.1']
    #allocation5 [shape = 'u8[4096]{0}', space=vmem, size = 0x1000, scoped, tag = 'input window, operand 1, single buffered']
    #allocation6 [shape = 's32[1]{0}', space=sflag, size = 0x4, scoped, tag = 'scoped memory for tpu_custom_call.1']
    #allocation7 [shape = 'u8[32768]{0}', space=vmem, size = 0x8000, scoped, tag = 'output window, operand 0, single buffered']
    %7 = vsyncpa [#allocation3], 0
    %8 = vsyncpa [#allocation6], 0
    %9 = vsyncpa [#allocation4], 0
    // Predicated region
    $region2: #{tpu_custom_call.1} parent=1 // pred_check
      _
    $region3: #{tpu_custom_call.1} parent=1 // pred_check_branch
      %11 = sbr.rel (0) target = $region5
    $region4: #{tpu_custom_call.1} parent=1 // pred_region
      %s13 = ssub.s32 1024, 1024
      %14 = vsyncadd [#allocation3], %s13
      %s16 = sshll.u32 [#allocation2], 4
      %s17 = int_to_ptr.vmem [resolvable:$true] %s16
      %19 = dma.hbm_to_vmem [thread:$0]  %s0, 1024, %s17, [#allocation3]
    $region5: #{tpu_custom_call.1} parent=1 // pred_fallthru
      _
    // Predicated region
    $region6: #{tpu_custom_call.1} parent=1 // pred_check
      _
    $region7: #{tpu_custom_call.1} parent=1 // pred_check_branch
      %21 = sbr.rel (0) target = $region9
    $region8: #{tpu_custom_call.1} parent=1 // pred_region
      %s23 = ssub.s32 128, 128
      %24 = vsyncadd [#allocation6], %s23
      %s26 = sshll.u32 [#allocation5], 4
      %s27 = int_to_ptr.vmem [resolvable:$true] %s26
      %29 = dma.hbm_to_vmem [thread:$0]  %s1, 128, %s27, [#allocation6]
    $region9: #{tpu_custom_call.1} parent=1 // pred_fallthru
      _
    // Predicated region
    $region10: #{tpu_custom_call.1} parent=1 // pred_check
      _
    $region11: #{tpu_custom_call.1} parent=1 // pred_check_branch
      %31 = sbr.rel (0) target = $region13
    $region12: #{tpu_custom_call.1} parent=1 // pred_region
      %32 = dma.done [#allocation3], 1024
    $region13: #{tpu_custom_call.1} parent=1 // pred_fallthru
      _
    // Predicated region
    $region14: #{tpu_custom_call.1} parent=1 // pred_check
      _
    $region15: #{tpu_custom_call.1} parent=1 // pred_check_branch
      %34 = sbr.rel (0) target = $region17
    $region16: #{tpu_custom_call.1} parent=1 // pred_region
      %35 = dma.done [#allocation6], 128
    $region17: #{tpu_custom_call.1} parent=1 // pred_fallthru
      _
    %v36 = vld [vmem:[#allocation2] sm:$0xff]
    %v37 = vld [vmem:[#allocation2 + $0x8] sm:$0xff]
    %v38 = vld [vmem:[#allocation2 + $0x10] sm:$0xff]
    %v39 = vld [vmem:[#allocation2 + $0x18] sm:$0xff]
    %v40 = vld [vmem:[#allocation2 + $0x20] sm:$0xff]
    %v41 = vld [vmem:[#allocation2 + $0x28] sm:$0xff]
    %v42 = vld [vmem:[#allocation2 + $0x30] sm:$0xff]
    %v43 = vld [vmem:[#allocation2 + $0x38] sm:$0xff]
    %v44 = vld [vmem:[#allocation5] sm:$0xff]
    %v46 = vlaneseq
    %v47 = vshrl.u32 %v46, 7
    %v48 = vsub.s32 0, %v47
    %v49 = vrot.slane %v44, %v48
    %v50 = vlaneseq
    %v51 = vshrl.u32 %v50, 7
    %v52 = vsub.s32 1, %v51
    %v53 = vrot.slane %v44, %v52
    %v54 = vlaneseq
    %v55 = vshrl.u32 %v54, 7
    %v56 = vsub.s32 2, %v55
    %v57 = vrot.slane %v44, %v56
    %v58 = vlaneseq
    %v59 = vshrl.u32 %v58, 7
    %v60 = vsub.s32 3, %v59
    %v61 = vrot.slane %v44, %v60
    %v62 = vlaneseq
    %v63 = vshrl.u32 %v62, 7
    %v64 = vsub.s32 4, %v63
    %v65 = vrot.slane %v44, %v64
    %v66 = vlaneseq
    %v67 = vshrl.u32 %v66, 7
    %v68 = vsub.s32 5, %v67
    %v69 = vrot.slane %v44, %v68
    %v70 = vlaneseq
    %v71 = vshrl.u32 %v70, 7
    %v72 = vsub.s32 6, %v71
    %v73 = vrot.slane %v44, %v72
    %v74 = vlaneseq
    %v75 = vshrl.u32 %v74, 7
    %v76 = vsub.s32 7, %v75
    %v77 = vrot.slane %v44, %v76
    %v86 = vadd.f32 %v36, %v49
    %v87 = vadd.f32 %v37, %v53
    %v88 = vadd.f32 %v38, %v57
    %v89 = vadd.f32 %v39, %v61
    %v90 = vadd.f32 %v40, %v65
    %v91 = vadd.f32 %v41, %v69
    %v92 = vadd.f32 %v42, %v73
    %v93 = vadd.f32 %v43, %v77
    %94 = vst [vmem:[#allocation7] sm:$0xff] %v86
    %95 = vst [vmem:[#allocation7 + $0x8] sm:$0xff] %v87
    %96 = vst [vmem:[#allocation7 + $0x10] sm:$0xff] %v88
    %97 = vst [vmem:[#allocation7 + $0x18] sm:$0xff] %v89
    %98 = vst [vmem:[#allocation7 + $0x20] sm:$0xff] %v90
    %99 = vst [vmem:[#allocation7 + $0x28] sm:$0xff] %v91
    %100 = vst [vmem:[#allocation7 + $0x30] sm:$0xff] %v92
    %101 = vst [vmem:[#allocation7 + $0x38] sm:$0xff] %v93
    // Predicated region
    $region18: #{tpu_custom_call.1} parent=1 // pred_check
      _
    $region19: #{tpu_custom_call.1} parent=1 // pred_check_branch
      %103 = sbr.rel (0) target = $region21
    $region20: #{tpu_custom_call.1} parent=1 // pred_region
      %s105 = ssub.s32 1024, 1024
      %106 = vsyncadd [#allocation4], %s105
      %s108 = sshll.u32 [#allocation7], 4
      %s109 = int_to_ptr.vmem [resolvable:$true] %s108
      %111 = dma.vmem_to_hbm [thread:$0]  %s109, 1024, %s2, [#allocation4]
    $region21: #{tpu_custom_call.1} parent=1 // pred_fallthru
      _
    // Predicated region
    $region22: #{tpu_custom_call.1} parent=1 // pred_check
      _
    $region23: #{tpu_custom_call.1} parent=1 // pred_check_branch
      %113 = sbr.rel (0) target = $region25
    $region24: #{tpu_custom_call.1} parent=1 // pred_region
      %114 = dma.done [#allocation4], 1024
    $region25: #{tpu_custom_call.1} parent=1 // pred_fallthru
      _
    %115 = vsyncpa [#allocation3], 1
    %116 = vsyncpa [#allocation6], 1
    %117 = vsyncpa [#allocation4], 1

</llo_original>
